<compile_context>
chip_gen: v7x
topology: tpu7x:2x2x1
jax: 0.10.0
libtpu: 0.0.40
codegen_flags: <defaults>
</compile_context>

<pallas_src>
import functools

import jax
import jax.numpy as jnp
from jax.experimental import pallas as pl
from jax.experimental.pallas import tpu as pltpu

BF16 = jnp.bfloat16
F32 = jnp.float32


def _layernorm(v, w, b, eps):
    mu = jnp.mean(v, axis=-1, keepdims=True)
    d = v - mu
    var = jnp.mean(d * d, axis=-1, keepdims=True)
    return d * jax.lax.rsqrt(var + eps) * w + b


# ---------------------------------------------------------------------------
# Single-buffering probe: grid-invariant inputs waste VMEM if double-buffered.
# pipeline_mode=pl.Buffered(1) removes the second buffer; probe once whether
# this backend accepts it end-to-end and fall back silently otherwise.
# ---------------------------------------------------------------------------
_BUFFERED1_OK = None


def _probe_kernel(x_ref, o_ref):
    o_ref[...] = x_ref[...]


def _single_buffer_supported():
    global _BUFFERED1_OK
    if _BUFFERED1_OK is not None:
        return _BUFFERED1_OK
    try:
        spec = pl.BlockSpec((8, 128), lambda i: (0, 0), pipeline_mode=pl.Buffered(1))
        fn = pl.pallas_call(
            _probe_kernel,
            out_shape=jax.ShapeDtypeStruct((8, 128), jnp.float32),
            grid_spec=pltpu.PrefetchScalarGridSpec(
                num_scalar_prefetch=0,
                grid=(1,),
                in_specs=[spec],
                out_specs=pl.BlockSpec((8, 128), lambda i: (0, 0))),
        )
        jax.block_until_ready(fn(jnp.zeros((8, 128), jnp.float32)))
        _BUFFERED1_OK = True
    except Exception:
        _BUFFERED1_OK = False
    return _BUFFERED1_OK


def _vmem_budget():
    """(physical VMEM bytes, vmem_limit_bytes to request)."""
    cap = 128 * 1024 * 1024
    try:
        cap = int(getattr(pltpu.get_tpu_info(), "vmem_capacity_bytes", cap))
    except Exception:
        pass
    # leave compiler headroom: ~54 MiB on v7x (64 MiB phys), ~108 MiB on v5e/v6e.
    return cap, min(int(cap * 0.85), 112 * 1024 * 1024)


# ---------------------------------------------------------------------------
# Pass 1: per-tile K/V cache.  K stored pre-transposed (C, TQ) so the attention
# pass never transposes; V stored head-major so head selection is a free
# leading-axis index.  Transient working set is bounded by the (TQ, C) tile.
# ---------------------------------------------------------------------------
def _kv_kernel(x_ref, ln1w_ref, ln1b_ref, wk_ref, bk_ref, wv_ref, bv_ref,
               kt_ref, v_ref, *, n_heads, eps):
    _, TQ, C = x_ref.shape
    hd = C // n_heads

    xn = _layernorm(x_ref[0], ln1w_ref[0], ln1b_ref[0], eps)
    xb = xn.astype(BF16)
    k = jnp.dot(xb, wk_ref[...], preferred_element_type=F32) + bk_ref[0]   # (TQ, C) f32
    v = jnp.dot(xb, wv_ref[...], preferred_element_type=F32) + bv_ref[0]   # (TQ, C) f32

    # one f32 transpose per KV tile (instead of per head per query tile later)
    kt_ref[0] = k.T.astype(BF16)                                           # (C, TQ) bf16
    vb = v.astype(BF16)
    for h in range(n_heads):                                               # head-major V
        v_ref[0, h] = vb[:, h * hd:(h + 1) * hd]                           # (TQ, hd) bf16


# ---------------------------------------------------------------------------
# Pass 2: attention (per query tile, against the cached K^T/V) + residual + MLP.
# ---------------------------------------------------------------------------
def _attn_mlp_kernel(x_ref, kt_ref, v_ref,
                     ln1w_ref, ln1b_ref, wq_ref, bq_ref,
                     wproj_ref, bproj_ref,
                     ln2w_ref, ln2b_ref,
                     w1_ref, b1_ref, w2_ref, b2_ref,
                     o_ref, attn_buf,
                     *, n_heads, eps):
    _, TQ, C = x_ref.shape
    hd = C // n_heads
    scale = 1.0 / float(hd) ** 0.5

    x_t = x_ref[0]                                                         # (TQ, C) f32
    xn = _layernorm(x_t, ln1w_ref[0], ln1b_ref[0], eps)
    q = jnp.dot(xn.astype(BF16), wq_ref[...], preferred_element_type=F32) + bq_ref[0]
    q = (q * scale).astype(BF16)          # fold 1/sqrt(hd) into q once per tile

    # TODO(synk): pack two hd-wide heads per 128-lane slab for QK^T / PV.
    for h in range(n_heads):              # static, small head loop
        qh = q[:, h * hd:(h + 1) * hd]                                     # (TQ, hd) bf16
        kth = kt_ref[0, h * hd:(h + 1) * hd, :]                            # (hd, N)  bf16 (pre-transposed)
        vh = v_ref[0, h]                                                   # (N, hd)  bf16 (head-major)
        s = jnp.dot(qh, kth, preferred_element_type=F32)                   # (TQ, N)  f32
        s = s - jnp.max(s, axis=-1, keepdims=True)
        p = jnp.exp(s)
        p = p * pl.reciprocal(jnp.sum(p, axis=-1, keepdims=True), approx=True)
        oh = jnp.dot(p.astype(BF16), vh, preferred_element_type=F32)       # (TQ, hd) f32
        attn_buf[:, h * hd:(h + 1) * hd] = oh.astype(BF16)                 # concat via VMEM stores

    # single C-deep projection matmul (no per-head K-split)
    proj = jnp.dot(attn_buf[...], wproj_ref[...],
                   preferred_element_type=F32) + bproj_ref[0]              # (TQ, C) f32
    x1 = x_t + proj

    # ---- MLP ----------------------------------------------------------------
    x1n = _layernorm(x1, ln2w_ref[0], ln2b_ref[0], eps)
    h1 = jnp.dot(x1n.astype(BF16), w1_ref[...],
                 preferred_element_type=F32) + b1_ref[0]                   # (TQ, H)
    h1 = jax.nn.gelu(h1, approximate=False)        # PyTorch nn.GELU() = exact erf
    y2 = jnp.dot(h1.astype(BF16), w2_ref[...],
                 preferred_element_type=F32) + b2_ref[0]                   # (TQ, C)

    o_ref[0] = x1 + y2


def transformer_block(x, params, n_heads, eps=1e-5):
    B, N, C = x.shape
    H = params["w1"].shape[1]
    hd = C // n_heads

    vmem_cap, vmem_limit = _vmem_budget()

    # query/KV sequence tile (generation-aware: 256 only when VMEM allows)
    tq_pref = 256 if vmem_cap > 100 * 1024 * 1024 else 128
    if N % tq_pref == 0:
        TQ = tq_pref
    elif N % 128 == 0:
        TQ = 128
    else:
        TQ = N
    S = N // TQ

    def row(a):
        return a.reshape(1, -1).astype(F32)

    # split qkv into q / k / v columns; bf16 weights, f32 biases
    wqkv = params["wqkv"].astype(F32)
    bqkv = params["bqkv"].astype(F32)
    wq = wqkv[:, :C].astype(BF16)                  # (C, C)
    wk = wqkv[:, C:2 * C].astype(BF16)             # (C, C)
    wv = wqkv[:, 2 * C:].astype(BF16)              # (C, C)
    bq, bk, bv = row(bqkv[:C]), row(bqkv[C:2 * C]), row(bqkv[2 * C:])
    wproj = params["wproj"].astype(BF16)           # (C, C) — kept whole (fused projection)
    bproj = row(params["bproj"])
    w1, b1 = params["w1"].astype(BF16), row(params["b1"])
    w2, b2 = params["w2"].astype(BF16), row(params["b2"])
    ln1w, ln1b = row(params["ln1w"]), row(params["ln1b"])
    ln2w, ln2b = row(params["ln2w"]), row(params["ln2b"])

    single_buf = _single_buffer_supported()

    def const_spec(shape):
        nd = len(shape)
        index_map = lambda b, s: (0,) * nd
        if single_buf:
            return pl.BlockSpec(shape, index_map, pipeline_mode=pl.Buffered(1))
        return pl.BlockSpec(shape, index_map)

    # ---- pass 1: K^T / V cache (bf16, in HBM between the two calls) ---------
    kv_kernel = functools.partial(_kv_kernel, n_heads=n_heads, eps=eps)
    kt, vhm = pl.pallas_call(
        kv_kernel,
        out_shape=(jax.ShapeDtypeStruct((B, C, N), BF16),
                   jax.ShapeDtypeStruct((B, n_heads, N, hd), BF16)),
        grid_spec=pltpu.PrefetchScalarGridSpec(
            num_scalar_prefetch=0,
            grid=(B, S),
            in_specs=[
                pl.BlockSpec((1, TQ, C), lambda b, s: (b, s, 0)),   # x tile
                const_spec((1, C)), const_spec((1, C)),             # ln1 w, b
                const_spec((C, C)), const_spec((1, C)),             # Wk, bk
                const_spec((C, C)), const_spec((1, C)),             # Wv, bv
            ],
            out_specs=(pl.BlockSpec((1, C, TQ), lambda b, s: (b, 0, s)),
                       pl.BlockSpec((1, n_heads, TQ, hd), lambda b, s: (b, 0, s, 0))),
        ),
        compiler_params=pltpu.CompilerParams(
            dimension_semantics=("parallel", "parallel"),
            vmem_limit_bytes=vmem_limit),
    )(x, ln1w, ln1b, wk, bk, wv, bv)

    # ---- pass 2: attention + MLP per query tile ------------------------------
    main_kernel = functools.partial(_attn_mlp_kernel, n_heads=n_heads, eps=eps)
    return pl.pallas_call(
        main_kernel,
        out_shape=jax.ShapeDtypeStruct((B, N, C), F32),
        grid_spec=pltpu.PrefetchScalarGridSpec(
            num_scalar_prefetch=0,
            grid=(B, S),
            in_specs=[
                pl.BlockSpec((1, TQ, C), lambda b, s: (b, s, 0)),            # x query tile
                pl.BlockSpec((1, C, N), lambda b, s: (b, 0, 0)),             # K^T (per batch elem)
                pl.BlockSpec((1, n_heads, N, hd), lambda b, s: (b, 0, 0, 0)),  # V head-major
                const_spec((1, C)), const_spec((1, C)),                      # ln1 w, b
                const_spec((C, C)), const_spec((1, C)),                      # Wq, bq
                const_spec((C, C)), const_spec((1, C)),                      # Wproj, bproj
                const_spec((1, C)), const_spec((1, C)),                      # ln2 w, b
                const_spec((C, H)), const_spec((1, H)),                      # fc1 w, b
                const_spec((H, C)), const_spec((1, C)),                      # fc2 w, b
            ],
            out_specs=pl.BlockSpec((1, TQ, C), lambda b, s: (b, s, 0)),
            scratch_shapes=[pltpu.VMEM((TQ, C), BF16)],                      # concat'd head outputs
        ),
        compiler_params=pltpu.CompilerParams(
            dimension_semantics=("parallel", "parallel"),
            vmem_limit_bytes=vmem_limit),
    )(x, kt, vhm,
      ln1w, ln1b, wq, bq, wproj, bproj, ln2w, ln2b, w1, b1, w2, b2)


# ----------------------------- pure-JAX (f32) reference -----------------------------
def _ref_block(x, p, n_heads, eps=1e-5):
    B, N, C = x.shape
    hd = C // n_heads

    def ln(v, w, b):
        mu = v.mean(-1, keepdims=True)
        var = ((v - mu) ** 2).mean(-1, keepdims=True)
        return (v - mu) / jnp.sqrt(var + eps) * w + b

    xn = ln(x, p["ln1w"], p["ln1b"])
    qkv = xn @ p["wqkv"] + p["bqkv"]                       # (B, N, 3C)
    qkv = qkv.reshape(B, N, 3, n_heads, hd).transpose(2, 0, 3, 1, 4)
    q, k, v = qkv[0], qkv[1], qkv[2]                       # (B, nh, N, hd)
    s = jnp.einsum("bhqd,bhkd->bhqk", q, k) / jnp.sqrt(hd)
    a = jax.nn.softmax(s, axis=-1)
    o = jnp.einsum("bhqk,bhkd->bhqd", a, v)
    o = o.transpose(0, 2, 1, 3).reshape(B, N, C)
    x1 = x + (o @ p["wproj"] + p["bproj"])

    x1n = ln(x1, p["ln2w"], p["ln2b"])
    h = jax.nn.gelu(x1n @ p["w1"] + p["b1"], approximate=False)
    return x1 + (h @ p["w2"] + p["b2"])


if __name__ == "__main__":
    B, N, C = 2, 8, 32
    n_heads = 4
    H = int(C * 4.0)

    key = jax.random.PRNGKey(0)
    ks = jax.random.split(key, 10)
    params = {
        "ln1w": jnp.ones((C,), jnp.float32),
        "ln1b": jnp.zeros((C,), jnp.float32),
        "wqkv": 0.05 * jax.random.normal(ks[0], (C, 3 * C), jnp.float32),
        "bqkv": 0.05 * jax.random.normal(ks[1], (3 * C,), jnp.float32),
        "wproj": 0.05 * jax.random.normal(ks[2], (C, C), jnp.float32),
        "bproj": 0.05 * jax.random.normal(ks[3], (C,), jnp.float32),
        "ln2w": jnp.ones((C,), jnp.float32),
        "ln2b": jnp.zeros((C,), jnp.float32),
        "w1": 0.05 * jax.random.normal(ks[4], (C, H), jnp.float32),
        "b1": 0.05 * jax.random.normal(ks[5], (H,), jnp.float32),
        "w2": 0.05 * jax.random.normal(ks[6], (H, C), jnp.float32),
        "b2": 0.05 * jax.random.normal(ks[7], (C,), jnp.float32),
    }
    x = jax.random.normal(ks[8], (B, N, C), jnp.float32)

    out = transformer_block(x, params, n_heads)
    jax.block_until_ready(out)

    ref = _ref_block(x, params, n_heads)
    assert out.shape == (B, N, C)
    err = float(jnp.abs(out - ref).max())
    # tolerance loosened vs. the f32 reference: matmuls run in bf16 on the MXU and
    # the softmax denominator uses pl.reciprocal(approx=True) (intentional).
    assert jnp.allclose(out, ref, atol=2e-2, rtol=2e-2), err

    print("KERNEL_OK")
</pallas_src>

<mosaic_0001>
module attributes {stable_mosaic.version = 11 : i64} {
  func.func @_probe_kernel(%arg0: i32, %arg1: memref<8x128xf32, #tpu.memory_space<vmem>>, %arg2: memref<8x128xf32, #tpu.memory_space<vmem>>) attributes {dimension_semantics = [#tpu.dimension_semantics<arbitrary>], iteration_bounds = array<i64: 1>, scalar_prefetch = 0 : i64, scratch_operands = 0 : i64, tpu.core_type = #tpu.core_type<tc>, window_params = [{pipeline_mode = #tpu.pipeline_mode<synchronous>, transform_indices = @transform_0, window_bounds = array<i64: 8, 128>}, {pipeline_mode = #tpu.pipeline_mode<synchronous>, transform_indices = @transform_1, window_bounds = array<i64: 8, 128>}]} {
    %c0 = arith.constant 0 : index
    %c0_0 = arith.constant 0 : index
    %0 = vector.load %arg1[%c0, %c0_0] : memref<8x128xf32, #tpu.memory_space<vmem>>, vector<8x128xf32>
    %c0_1 = arith.constant 0 : index
    %c0_2 = arith.constant 0 : index
    %1 = vector.load %arg2[%c0_1, %c0_2] : memref<8x128xf32, #tpu.memory_space<vmem>>, vector<8x128xf32>
    tpu.vector_store %arg2[%c0_1, %c0_2], %0 {strides = array<i32>} : memref<8x128xf32, #tpu.memory_space<vmem>>, vector<8x128xf32>,
    return
  }
  func.func @transform_0(%arg0: i32) -> (i32, i32) {
    %c0_i32 = arith.constant 0 : i32
    %c0_i32_0 = arith.constant 0 : i32
    %c0_i32_1 = arith.constant 0 : i32
    return %c0_i32, %c0_i32_0 : i32, i32
  }
  func.func @transform_1(%arg0: i32) -> (i32, i32) {
    %c0_i32 = arith.constant 0 : i32
    %c0_i32_0 = arith.constant 0 : i32
    %c0_i32_1 = arith.constant 0 : i32
    return %c0_i32, %c0_i32_0 : i32, i32
  }
}

module attributes {stable_mosaic.version = 11 : i64} {
  func.func @_kv_kernel(%arg0: i32, %arg1: i32, %arg2: memref<1x8x32xf32, #tpu.memory_space<vmem>>, %arg3: memref<1x32xf32, #tpu.memory_space<vmem>>, %arg4: memref<1x32xf32, #tpu.memory_space<vmem>>, %arg5: memref<32x32xbf16, #tpu.memory_space<vmem>>, %arg6: memref<1x32xf32, #tpu.memory_space<vmem>>, %arg7: memref<32x32xbf16, #tpu.memory_space<vmem>>, %arg8: memref<1x32xf32, #tpu.memory_space<vmem>>, %arg9: memref<1x32x8xbf16, #tpu.memory_space<vmem>>, %arg10: memref<1x4x8x8xbf16, #tpu.memory_space<vmem>>) attributes {dimension_semantics = [#tpu.dimension_semantics<parallel>, #tpu.dimension_semantics<parallel>], iteration_bounds = array<i64: 2, 1>, scalar_prefetch = 0 : i64, scratch_operands = 0 : i64, tpu.core_type = #tpu.core_type<tc>, window_params = [{transform_indices = @transform_0, window_bounds = array<i64: 1, 8, 32>}, {pipeline_mode = #tpu.pipeline_mode<synchronous>, transform_indices = @transform_1, window_bounds = array<i64: 1, 32>}, {pipeline_mode = #tpu.pipeline_mode<synchronous>, transform_indices = @transform_2, window_bounds = array<i64: 1, 32>}, {pipeline_mode = #tpu.pipeline_mode<synchronous>, transform_indices = @transform_3, window_bounds = array<i64: 32, 32>}, {pipeline_mode = #tpu.pipeline_mode<synchronous>, transform_indices = @transform_4, window_bounds = array<i64: 1, 32>}, {pipeline_mode = #tpu.pipeline_mode<synchronous>, transform_indices = @transform_5, window_bounds = array<i64: 32, 32>}, {pipeline_mode = #tpu.pipeline_mode<synchronous>, transform_indices = @transform_6, window_bounds = array<i64: 1, 32>}, {transform_indices = @transform_7, window_bounds = array<i64: 1, 32, 8>}, {transform_indices = @transform_8, window_bounds = array<i64: 1, 4, 8, 8>}]} {
    %c0 = arith.constant 0 : index
    %c0_0 = arith.constant 0 : index
    %c0_1 = arith.constant 0 : index
    %0 = vector.load %arg2[%c0, %c0_0, %c0_1] : memref<1x8x32xf32, #tpu.memory_space<vmem>>, vector<1x8x32xf32>
    %1 = vector.shape_cast %0 : vector<1x8x32xf32> to vector<8x32xf32>
    %c0_2 = arith.constant 0 : index
    %c0_3 = arith.constant 0 : index
    %2 = vector.load %arg3[%c0_2, %c0_3] : memref<1x32xf32, #tpu.memory_space<vmem>>, vector<1x32xf32>
    %3 = vector.shape_cast %2 : vector<1x32xf32> to vector<32xf32>
    %c0_4 = arith.constant 0 : index
    %c0_5 = arith.constant 0 : index
    %4 = vector.load %arg4[%c0_4, %c0_5] : memref<1x32xf32, #tpu.memory_space<vmem>>, vector<1x32xf32>
    %5 = vector.shape_cast %4 : vector<1x32xf32> to vector<32xf32>
    %cst = arith.constant dense<0.000000e+00> : vector<8xf32>
    %6 = vector.multi_reduction <add>, %1, %cst [1] : vector<8x32xf32> to vector<8xf32>
    %7 = vector.shape_cast %6 : vector<8xf32> to vector<8x1xf32>
    %cst_6 = arith.constant 3.200000e+01 : f32
    %8 = vector.broadcast %cst_6 : f32 to vector<8x1xf32>
    %9 = arith.divf %7, %8 : vector<8x1xf32>
    %10 = vector.broadcast %9 : vector<8x1xf32> to vector<8x32xf32>
    %11 = arith.subf %1, %10 : vector<8x32xf32>
    %12 = arith.mulf %11, %11 : vector<8x32xf32>
    %cst_7 = arith.constant dense<0.000000e+00> : vector<8xf32>
    %13 = vector.multi_reduction <add>, %12, %cst_7 [1] : vector<8x32xf32> to vector<8xf32>
    %14 = vector.shape_cast %13 : vector<8xf32> to vector<8x1xf32>
    %cst_8 = arith.constant 3.200000e+01 : f32
    %15 = vector.broadcast %cst_8 : f32 to vector<8x1xf32>
    %16 = arith.divf %14, %15 : vector<8x1xf32>
    %cst_9 = arith.constant 9.99999974E-6 : f32
    %17 = vector.broadcast %cst_9 : f32 to vector<8x1xf32>
    %18 = arith.addf %16, %17 : vector<8x1xf32>
    %19 = math.rsqrt %18 : vector<8x1xf32>
    %20 = vector.broadcast %19 : vector<8x1xf32> to vector<8x32xf32>
    %21 = arith.mulf %11, %20 : vector<8x32xf32>
    %22 = vector.shape_cast %3 : vector<32xf32> to vector<1x32xf32>
    %23 = vector.broadcast %22 : vector<1x32xf32> to vector<8x32xf32>
    %24 = arith.mulf %21, %23 : vector<8x32xf32>
    %25 = vector.shape_cast %5 : vector<32xf32> to vector<1x32xf32>
    %26 = vector.broadcast %25 : vector<1x32xf32> to vector<8x32xf32>
    %27 = arith.addf %24, %26 : vector<8x32xf32>
    %28 = arith.truncf %27 : vector<8x32xf32> to vector<8x32xbf16>
    %c0_10 = arith.constant 0 : index
    %c0_11 = arith.constant 0 : index
    %29 = vector.load %arg5[%c0_10, %c0_11] : memref<32x32xbf16, #tpu.memory_space<vmem>>, vector<32x32xbf16>
    %cst_12 = arith.constant dense<0.000000e+00> : vector<8x32xf32>
    %30 = tpu.matmul %28, %29, %cst_12 {dimension_numbers = #tpu.dot_dimension_numbers<[1], [0], [0], [1], [0, 0, 1, 1], [], []>} : vector<8x32xbf16>, vector<32x32xbf16>, vector<8x32xf32> -> vector<8x32xf32>
    %c0_13 = arith.constant 0 : index
    %c0_14 = arith.constant 0 : index
    %31 = vector.load %arg6[%c0_13, %c0_14] : memref<1x32xf32, #tpu.memory_space<vmem>>, vector<1x32xf32>
    %32 = vector.shape_cast %31 : vector<1x32xf32> to vector<32xf32>
    %33 = vector.shape_cast %32 : vector<32xf32> to vector<1x32xf32>
    %34 = vector.broadcast %33 : vector<1x32xf32> to vector<8x32xf32>
    %35 = arith.addf %30, %34 : vector<8x32xf32>
    %c0_15 = arith.constant 0 : index
    %c0_16 = arith.constant 0 : index
    %36 = vector.load %arg7[%c0_15, %c0_16] : memref<32x32xbf16, #tpu.memory_space<vmem>>, vector<32x32xbf16>
    %cst_17 = arith.constant dense<0.000000e+00> : vector<8x32xf32>
    %37 = tpu.matmul %28, %36, %cst_17 {dimension_numbers = #tpu.dot_dimension_numbers<[1], [0], [0], [1], [0, 0, 1, 1], [], []>} : vector<8x32xbf16>, vector<32x32xbf16>, vector<8x32xf32> -> vector<8x32xf32>
    %c0_18 = arith.constant 0 : index
    %c0_19 = arith.constant 0 : index
    %38 = vector.load %arg8[%c0_18, %c0_19] : memref<1x32xf32, #tpu.memory_space<vmem>>, vector<1x32xf32>
    %39 = vector.shape_cast %38 : vector<1x32xf32> to vector<32xf32>
    %40 = vector.shape_cast %39 : vector<32xf32> to vector<1x32xf32>
    %41 = vector.broadcast %40 : vector<1x32xf32> to vector<8x32xf32>
    %42 = arith.addf %37, %41 : vector<8x32xf32>
    %43 = tpu.transpose %35, [1, 0] : vector<8x32xf32> -> vector<32x8xf32>
    %44 = arith.truncf %43 : vector<32x8xf32> to vector<32x8xbf16>
    %c0_20 = arith.constant 0 : index
    %c0_21 = arith.constant 0 : index
    %c0_22 = arith.constant 0 : index
    %45 = vector.load %arg9[%c0_20, %c0_21, %c0_22] : memref<1x32x8xbf16, #tpu.memory_space<vmem>>, vector<1x32x8xbf16>
    %46 = vector.shape_cast %45 : vector<1x32x8xbf16> to vector<32x8xbf16>
    %47 = vector.shape_cast %44 : vector<32x8xbf16> to vector<1x32x8xbf16>
    tpu.vector_store %arg9[%c0_20, %c0_21, %c0_22], %47 {strides = array<i32>} : memref<1x32x8xbf16, #tpu.memory_space<vmem>>, vector<1x32x8xbf16>,
    %48 = arith.truncf %42 : vector<8x32xf32> to vector<8x32xbf16>
    %49 = vector.extract_strided_slice %48 {offsets = [0, 0], sizes = [8, 8], strides = [1, 1]} : vector<8x32xbf16> to vector<8x8xbf16>
    %c0_23 = arith.constant 0 : index
    %c0_24 = arith.constant 0 : index
    %c0_25 = arith.constant 0 : index
    %c0_26 = arith.constant 0 : index
    %50 = vector.load %arg10[%c0_23, %c0_24, %c0_25, %c0_26] : memref<1x4x8x8xbf16, #tpu.memory_space<vmem>>, vector<1x1x8x8xbf16>
    %51 = vector.shape_cast %50 : vector<1x1x8x8xbf16> to vector<8x8xbf16>
    %52 = vector.shape_cast %49 : vector<8x8xbf16> to vector<1x1x8x8xbf16>
    tpu.vector_store %arg10[%c0_23, %c0_24, %c0_25, %c0_26], %52 {strides = array<i32>} : memref<1x4x8x8xbf16, #tpu.memory_space<vmem>>, vector<1x1x8x8xbf16>,
    %53 = vector.extract_strided_slice %48 {offsets = [0, 8], sizes = [8, 8], strides = [1, 1]} : vector<8x32xbf16> to vector<8x8xbf16>
    %c0_27 = arith.constant 0 : index
    %c1 = arith.constant 1 : index
    %c0_28 = arith.constant 0 : index
    %c0_29 = arith.constant 0 : index
    %54 = vector.load %arg10[%c0_27, %c1, %c0_28, %c0_29] : memref<1x4x8x8xbf16, #tpu.memory_space<vmem>>, vector<1x1x8x8xbf16>
    %55 = vector.shape_cast %54 : vector<1x1x8x8xbf16> to vector<8x8xbf16>
    %56 = vector.shape_cast %53 : vector<8x8xbf16> to vector<1x1x8x8xbf16>
    tpu.vector_store %arg10[%c0_27, %c1, %c0_28, %c0_29], %56 {strides = array<i32>} : memref<1x4x8x8xbf16, #tpu.memory_space<vmem>>, vector<1x1x8x8xbf16>,
    %57 = vector.extract_strided_slice %48 {offsets = [0, 16], sizes = [8, 8], strides = [1, 1]} : vector<8x32xbf16> to vector<8x8xbf16>
    %c0_30 = arith.constant 0 : index
    %c2 = arith.constant 2 : index
    %c0_31 = arith.constant 0 : index
    %c0_32 = arith.constant 0 : index
    %58 = vector.load %arg10[%c0_30, %c2, %c0_31, %c0_32] : memref<1x4x8x8xbf16, #tpu.memory_space<vmem>>, vector<1x1x8x8xbf16>
    %59 = vector.shape_cast %58 : vector<1x1x8x8xbf16> to vector<8x8xbf16>
    %60 = vector.shape_cast %57 : vector<8x8xbf16> to vector<1x1x8x8xbf16>
    tpu.vector_store %arg10[%c0_30, %c2, %c0_31, %c0_32], %60 {strides = array<i32>} : memref<1x4x8x8xbf16, #tpu.memory_space<vmem>>, vector<1x1x8x8xbf16>,
    %61 = vector.extract_strided_slice %48 {offsets = [0, 24], sizes = [8, 8], strides = [1, 1]} : vector<8x32xbf16> to vector<8x8xbf16>
    %c0_33 = arith.constant 0 : index
    %c3 = arith.constant 3 : index
    %c0_34 = arith.constant 0 : index
    %c0_35 = arith.constant 0 : index
    %62 = vector.load %arg10[%c0_33, %c3, %c0_34, %c0_35] : memref<1x4x8x8xbf16, #tpu.memory_space<vmem>>, vector<1x1x8x8xbf16>
    %63 = vector.shape_cast %62 : vector<1x1x8x8xbf16> to vector<8x8xbf16>
    %64 = vector.shape_cast %61 : vector<8x8xbf16> to vector<1x1x8x8xbf16>
    tpu.vector_store %arg10[%c0_33, %c3, %c0_34, %c0_35], %64 {strides = array<i32>} : memref<1x4x8x8xbf16, #tpu.memory_space<vmem>>, vector<1x1x8x8xbf16>,
    return
  }
  func.func @transform_0(%arg0: i32, %arg1: i32) -> (i32, i32, i32) {
    %c0_i32 = arith.constant 0 : i32
    %c0_i32_0 = arith.constant 0 : i32
    return %arg0, %arg1, %c0_i32 : i32, i32, i32
  }
  func.func @transform_1(%arg0: i32, %arg1: i32) -> (i32, i32) {
    %c0_i32 = arith.constant 0 : i32
    %c0_i32_0 = arith.constant 0 : i32
    %c0_i32_1 = arith.constant 0 : i32
    return %c0_i32, %c0_i32_0 : i32, i32
  }
  func.func @transform_2(%arg0: i32, %arg1: i32) -> (i32, i32) {
    %c0_i32 = arith.constant 0 : i32
    %c0_i32_0 = arith.constant 0 : i32
    %c0_i32_1 = arith.constant 0 : i32
    return %c0_i32, %c0_i32_0 : i32, i32
  }
  func.func @transform_3(%arg0: i32, %arg1: i32) -> (i32, i32) {
    %c0_i32 = arith.constant 0 : i32
    %c0_i32_0 = arith.constant 0 : i32
    %c0_i32_1 = arith.constant 0 : i32
    return %c0_i32, %c0_i32_0 : i32, i32
  }
  func.func @transform_4(%arg0: i32, %arg1: i32) -> (i32, i32) {
    %c0_i32 = arith.constant 0 : i32
    %c0_i32_0 = arith.constant 0 : i32
    %c0_i32_1 = arith.constant 0 : i32
    return %c0_i32, %c0_i32_0 : i32, i32
  }
  func.func @transform_5(%arg0: i32, %arg1: i32) -> (i32, i32) {
    %c0_i32 = arith.constant 0 : i32
    %c0_i32_0 = arith.constant 0 : i32
    %c0_i32_1 = arith.constant 0 : i32
    return %c0_i32, %c0_i32_0 : i32, i32
  }
  func.func @transform_6(%arg0: i32, %arg1: i32) -> (i32, i32) {
    %c0_i32 = arith.constant 0 : i32
    %c0_i32_0 = arith.constant 0 : i32
    %c0_i32_1 = arith.constant 0 : i32
    return %c0_i32, %c0_i32_0 : i32, i32
  }
  func.func @transform_7(%arg0: i32, %arg1: i32) -> (i32, i32, i32) {
    %c0_i32 = arith.constant 0 : i32
    %c0_i32_0 = arith.constant 0 : i32
    return %arg0, %c0_i32, %arg1 : i32, i32, i32
  }
  func.func @transform_8(%arg0: i32, %arg1: i32) -> (i32, i32, i32, i32) {
    %c0_i32 = arith.constant 0 : i32
    %c0_i32_0 = arith.constant 0 : i32
    %c0_i32_1 = arith.constant 0 : i32
    return %arg0, %c0_i32, %arg1, %c0_i32_0 : i32, i32, i32, i32
  }
}

</mosaic_0001>

<llo_original>
// kernel: tpu_custom_call.1
$region0: #{tpu_custom_call.1}
  #allocation0 [shape = 'u32[]', space=smem, size = 0x4, offset = 0x4, fixed_abs, tag = 'smem constant byte address 0x4 - core index']
  #allocation1 [shape = 'u32[144,128]{1,0:T(1,128)}', space=vmem, size = 0x12000, scoped, tag = 'internal scratch']
  %s0 = inlined_call_operand.hbm [shape: f32[8,128], index: 0, kind: input, shape index: {}]
  %s1 = inlined_call_operand.hbm [shape: f32[8,128], index: 1, kind: output, shape index: {}]
  %s2 = sld [smem:[#allocation0]]
  $region18: #{tpu_custom_call.1} parent=0
    _
  %s4 = ssub.s32 1, %s2
  %s5 = scalar_select 0, %s4, %s2
  $region1: #{tpu_custom_call.1} parent=0
    #allocation2 [shape = 'u8[4096]{0}', space=vmem, size = 0x1000, scoped, tag = 'input window, operand 0, single buffered']
    #allocation3 [shape = 's32[1]{0}', space=sflag, size = 0x4, scoped, tag = 'scoped memory for tpu_custom_call.1']
    #allocation4 [shape = 's32[1]{0}', space=sflag, size = 0x4, scoped, tag = 'scoped memory for tpu_custom_call.1']
    #allocation5 [shape = 'u8[4096]{0}', space=vmem, size = 0x1000, scoped, tag = 'output window, operand 0, single buffered']
    %6 = vsyncpa [#allocation3], 0
    %7 = vsyncpa [#allocation4], 0
    // Predicated region
    $region2: #{tpu_custom_call.1} parent=1 // pred_check
      _
    $region3: #{tpu_custom_call.1} parent=1 // pred_check_branch
      %9 = sbr.rel (0) target = $region5
    $region4: #{tpu_custom_call.1} parent=1 // pred_region
      %s11 = ssub.s32 128, 128
      %12 = vsyncadd [#allocation3], %s11
      %s14 = sshll.u32 [#allocation2], 4
      %s15 = int_to_ptr.vmem [resolvable:$true] %s14
      %17 = dma.hbm_to_vmem [thread:$0]  %s0, 128, %s15, [#allocation3]
    $region5: #{tpu_custom_call.1} parent=1 // pred_fallthru
      _
    // Predicated region
    $region6: #{tpu_custom_call.1} parent=1 // pred_check
      _
    $region7: #{tpu_custom_call.1} parent=1 // pred_check_branch
      %19 = sbr.rel (0) target = $region9
    $region8: #{tpu_custom_call.1} parent=1 // pred_region
      %20 = dma.done [#allocation3], 128
    $region9: #{tpu_custom_call.1} parent=1 // pred_fallthru
      _
    %v21 = vld [vmem:[#allocation2] sm:$0xff]
    %22 = vst [vmem:[#allocation5] sm:$0xff] %v21
    // Predicated region
    $region10: #{tpu_custom_call.1} parent=1 // pred_check
      _
    $region11: #{tpu_custom_call.1} parent=1 // pred_check_branch
      %24 = sbr.rel (0) target = $region13
    $region12: #{tpu_custom_call.1} parent=1 // pred_region
      %s26 = ssub.s32 128, 128
      %27 = vsyncadd [#allocation4], %s26
      %s29 = sshll.u32 [#allocation5], 4
      %s30 = int_to_ptr.vmem [resolvable:$true] %s29
      %32 = dma.vmem_to_hbm [thread:$0]  %s30, 128, %s1, [#allocation4]
    $region13: #{tpu_custom_call.1} parent=1 // pred_fallthru
      _
    // Predicated region
    $region14: #{tpu_custom_call.1} parent=1 // pred_check
      _
    $region15: #{tpu_custom_call.1} parent=1 // pred_check_branch
      %34 = sbr.rel (0) target = $region17
    $region16: #{tpu_custom_call.1} parent=1 // pred_region
      %35 = dma.done [#allocation4], 128
    $region17: #{tpu_custom_call.1} parent=1 // pred_fallthru
      _
    %36 = vsyncpa [#allocation3], 1
    %37 = vsyncpa [#allocation4], 1

// kernel: tpu_custom_call.1
$region0: #{tpu_custom_call.1}
  #allocation0 [shape = 'u32[]', space=smem, size = 0x4, offset = 0x4, fixed_abs, tag = 'smem constant byte address 0x4 - core index']
  #allocation1 [shape = 'u32[144,128]{1,0:T(1,128)}', space=vmem, size = 0x12000, scoped, tag = 'internal scratch']
  %s0 = inlined_call_operand.hbm [shape: f32[2,8,32], index: 0, kind: input, shape index: {}]
  %s1 = inlined_call_operand.hbm [shape: f32[1,32], index: 1, kind: input, shape index: {}]
  %s2 = inlined_call_operand.hbm [shape: f32[1,32], index: 2, kind: input, shape index: {}]
  %s3 = inlined_call_operand.hbm [shape: bf16[32,32], index: 3, kind: input, shape index: {}]
  %s4 = inlined_call_operand.hbm [shape: f32[1,32], index: 4, kind: input, shape index: {}]
  %s5 = inlined_call_operand.hbm [shape: bf16[32,32], index: 5, kind: input, shape index: {}]
  %s6 = inlined_call_operand.hbm [shape: f32[1,32], index: 6, kind: input, shape index: {}]
  %s7 = inlined_call_operand.hbm [shape: bf16[2,32,8], index: 7, kind: output, shape index: {0}]
  %s8 = inlined_call_operand.hbm [shape: bf16[2,4,8,8], index: 8, kind: output, shape index: {1}]
  %9 = xla_tuple %s7, %s8
  %s10 = sld [smem:[#allocation0]]
  $region97: #{tpu_custom_call.1} parent=0
    _
  %s12 = ssub.s32 1, %s10
  %s13 = scalar_select 0, %s12, %s10
  $region1: #{tpu_custom_call.1} parent=0
    #allocation2 [shape = 'u8[8192]{0}', space=vmem, size = 0x2000, scoped, tag = 'input window, operand 0']
    #allocation3 [shape = 's32[2]{0}', space=sflag, size = 0x8, scoped, tag = 'scoped memory for tpu_custom_call.1']
    #allocation4 [shape = 's32[2]{0}', space=sflag, size = 0x8, scoped, tag = 'scoped memory for tpu_custom_call.1']
    #allocation5 [shape = 'u8[512]{0}', space=vmem, size = 0x400, scoped, tag = 'input window, operand 1, single buffered']
    #allocation6 [shape = 's32[1]{0}', space=sflag, size = 0x4, scoped, tag = 'scoped memory for tpu_custom_call.1']
    #allocation7 [shape = 'u8[512]{0}', space=vmem, size = 0x400, scoped, tag = 'input window, operand 2, single buffered']
    #allocation8 [shape = 'u8[8192]{0}', space=vmem, size = 0x2000, scoped, tag = 'input window, operand 3, single buffered']
    #allocation9 [shape = 's32[1]{0}', space=sflag, size = 0x4, scoped, tag = 'scoped memory for tpu_custom_call.1']
    #allocation10 [shape = 'u8[512]{0}', space=vmem, size = 0x400, scoped, tag = 'input window, operand 4, single buffered']
    #allocation11 [shape = 'u8[8192]{0}', space=vmem, size = 0x2000, scoped, tag = 'input window, operand 5, single buffered']
    #allocation12 [shape = 's32[1]{0}', space=sflag, size = 0x4, scoped, tag = 'scoped memory for tpu_custom_call.1']
    #allocation13 [shape = 'u8[512]{0}', space=vmem, size = 0x400, scoped, tag = 'input window, operand 6, single buffered']
    #allocation14 [shape = 'u8[16384]{0}', space=vmem, size = 0x4000, scoped, tag = 'output window, operand 0']
    #allocation15 [shape = 'u8[16384]{0}', space=vmem, size = 0x4000, scoped, tag = 'output window, operand 1']
    #allocation16 [shape = 's32[2]{0}', space=sflag, size = 0x8, scoped, tag = 'scoped memory for tpu_custom_call.1']
    %14 = vsyncpa [#allocation3], 0
    %s15 = scalar_lea.sflag [#allocation3], 1
    %16 = vsyncpa %s15, 0
    %17 = vsyncpa [#allocation6], 0
    %18 = vsyncpa [#allocation9], 0
    %19 = vsyncpa [#allocation12], 0
    %20 = vsyncpa [#allocation4], 0
    %s21 = scalar_lea.sflag [#allocation4], 1
    %22 = vsyncpa %s21, 0
    %23 = vsyncpa [#allocation16], 0
    %s24 = scalar_lea.sflag [#allocation16], 1
    %25 = vsyncpa %s24, 0
    loop: start=0, step=1, limit=4
    $region2: #{tpu_custom_call.1} parent=1 // loop_pre_header
      _
    $region3: #{tpu_custom_call.1} parent=1 // loop_header
      %s27 = sphi 0, %s31
      %p28 = scmp.ge.s32.totalorder %s27, 4
      %s34 = sphi 0, %s46
      %s35 = sphi 0, %s42
      %s36 = sphi 0, %s34
      %s37 = sphi 0, %s35
      %s38 = sphi 0, %s36
      %s39 = sphi 0, %s37
      %s51 = sphi 0, %s53
      %s54 = sphi 0, %s51
      %s55 = sphi 0, %s54
      %s71 = sphi 0, %s55
      %s75 = sphi 0, %s75
      %s77 = sphi 0, %s75
      %s78 = sphi 0, %s77
      %s92 = sphi 0, %s78
      %s96 = sphi 0, %s96
      %s98 = sphi 0, %s96
      %s99 = sphi 0, %s98
      %s113 = sphi 0, %s99
      %s117 = sphi 0, %s117
      %s119 = sphi 0, %s117
      %s120 = sphi 0, %s119
      %s134 = sphi 0, %s120
      %s138 = sphi 0, %s138
      %s140 = sphi 0, %s138
      %s141 = sphi 0, %s140
      %s155 = sphi 0, %s141
      %s159 = sphi 0, %s159
      %s161 = sphi 0, %s159
      %s162 = sphi 0, %s161
      %s176 = sphi 0, %s162
      %s180 = sphi 0, %s180
      %s182 = sphi 0, %s180
      %s183 = sphi 0, %s182
      %s197 = sphi 0, %s183
      %s205 = sphi 0, %s207
      %s208 = sphi 0, %s205
      %s209 = sphi 0, %s208
      %s225 = sphi 0, %s209
      %s233 = sphi 0, %s235
      %s236 = sphi 0, %s233
      %s237 = sphi 0, %s236
      %s253 = sphi 0, %s237
    $region4: #{tpu_custom_call.1} parent=1 // loop_header_branch
      %30 = sbr.rel (%p28) target = $region8
    $region5: #{tpu_custom_call.1} parent=1 // loop_body
      %s32 = ssub.s32 %s27, 1
      %s33 = ssub.s32 %s27, 2
      %s40 = sadd.s32 1, %s35
      %p41 = scmp.ge.s32.totalorder %s40, 1
      %s42 = scalar_select %p41, 0, %s40
      %s43 = sadd.s32 1, %s34
      %s44 = scalar_select %p41, %s43, %s34
      %p45 = scmp.ge.s32.totalorder %s44, 2
      %s46 = scalar_select %p45, 0, %s44
      %s47 = ssub.s32 %s34, %s46
      %s48 = ssub.s32 %s35, %s42
      %s49 = sor.u32 %s47, %s48
      %p50 = scmp.eq.s32.totalorder %s49, 0
      %s52 = sadd.s32 %s51, 1
      %s53 = scalar_select %p50, %s51, %s52
      %p56 = pneg %p50
      %p57 = scmp.eq.s32.totalorder %s27, 1
      %p58 = por %p56, %p57
      %p59 = scmp.ne.s32.totalorder %s51, %s54
      %p60 = scmp.eq.s32.totalorder %s27, 0
      %p61 = por %p59, %p60
      %p62 = scmp.ne.s32.totalorder %s51, %s54
      %p63 = scmp.eq.s32.totalorder %s32, 1
      %p64 = por %p62, %p63
      %p65 = scmp.ne.s32.totalorder %s54, %s55
      %p66 = scmp.eq.s32.totalorder %s32, 0
      %p67 = por %p65, %p66
      %p68 = scmp.ne.s32.totalorder %s54, %s55
      %p69 = scmp.eq.s32.totalorder %s33, 1
      %p70 = por %p68, %p69
      %p72 = scmp.ne.s32.totalorder %s55, %s71
      %p73 = scmp.eq.s32.totalorder %s33, 0
      %p74 = por %p72, %p73
      %s76 = sadd.s32 %s75, 1
      %p79 = scmp.eq.s32.totalorder %s27, 1
      %p80 = scmp.ne.s32.totalorder %s75, %s77
      %p81 = scmp.eq.s32.totalorder %s27, 0
      %p82 = por %p80, %p81
      %p83 = scmp.ne.s32.totalorder %s75, %s77
      %p84 = scmp.eq.s32.totalorder %s32, 1
      %p85 = por %p83, %p84
      %p86 = scmp.ne.s32.totalorder %s77, %s78
      %p87 = scmp.eq.s32.totalorder %s32, 0
      %p88 = por %p86, %p87
      %p89 = scmp.ne.s32.totalorder %s77, %s78
      %p90 = scmp.eq.s32.totalorder %s33, 1
      %p91 = por %p89, %p90
      %p93 = scmp.ne.s32.totalorder %s78, %s92
      %p94 = scmp.eq.s32.totalorder %s33, 0
      %p95 = por %p93, %p94
      %s97 = sadd.s32 %s96, 1
      %p100 = scmp.eq.s32.totalorder %s27, 1
      %p101 = scmp.ne.s32.totalorder %s96, %s98
      %p102 = scmp.eq.s32.totalorder %s27, 0
      %p103 = por %p101, %p102
      %p104 = scmp.ne.s32.totalorder %s96, %s98
      %p105 = scmp.eq.s32.totalorder %s32, 1
      %p106 = por %p104, %p105
      %p107 = scmp.ne.s32.totalorder %s98, %s99
      %p108 = scmp.eq.s32.totalorder %s32, 0
      %p109 = por %p107, %p108
      %p110 = scmp.ne.s32.totalorder %s98, %s99
      %p111 = scmp.eq.s32.totalorder %s33, 1
      %p112 = por %p110, %p111
      %p114 = scmp.ne.s32.totalorder %s99, %s113
      %p115 = scmp.eq.s32.totalorder %s33, 0
      %p116 = por %p114, %p115
      %s118 = sadd.s32 %s117, 1
      %p121 = scmp.eq.s32.totalorder %s27, 1
      %p122 = scmp.ne.s32.totalorder %s117, %s119
      %p123 = scmp.eq.s32.totalorder %s27, 0
      %p124 = por %p122, %p123
      %p125 = scmp.ne.s32.totalorder %s117, %s119
      %p126 = scmp.eq.s32.totalorder %s32, 1
      %p127 = por %p125, %p126
      %p128 = scmp.ne.s32.totalorder %s119, %s120
      %p129 = scmp.eq.s32.totalorder %s32, 0
      %p130 = por %p128, %p129
      %p131 = scmp.ne.s32.totalorder %s119, %s120
      %p132 = scmp.eq.s32.totalorder %s33, 1
      %p133 = por %p131, %p132
      %p135 = scmp.ne.s32.totalorder %s120, %s134
      %p136 = scmp.eq.s32.totalorder %s33, 0
      %p137 = por %p135, %p136
      %s139 = sadd.s32 %s138, 1
      %p142 = scmp.eq.s32.totalorder %s27, 1
      %p143 = scmp.ne.s32.totalorder %s138, %s140
      %p144 = scmp.eq.s32.totalorder %s27, 0
      %p145 = por %p143, %p144
      %p146 = scmp.ne.s32.totalorder %s138, %s140
      %p147 = scmp.eq.s32.totalorder %s32, 1
      %p148 = por %p146, %p147
      %p149 = scmp.ne.s32.totalorder %s140, %s141
      %p150 = scmp.eq.s32.totalorder %s32, 0
      %p151 = por %p149, %p150
      %p152 = scmp.ne.s32.totalorder %s140, %s141
      %p153 = scmp.eq.s32.totalorder %s33, 1
      %p154 = por %p152, %p153
      %p156 = scmp.ne.s32.totalorder %s141, %s155
      %p157 = scmp.eq.s32.totalorder %s33, 0
      %p158 = por %p156, %p157
      %s160 = sadd.s32 %s159, 1
      %p163 = scmp.eq.s32.totalorder %s27, 1
      %p164 = scmp.ne.s32.totalorder %s159, %s161
      %p165 = scmp.eq.s32.totalorder %s27, 0
      %p166 = por %p164, %p165
      %p167 = scmp.ne.s32.totalorder %s159, %s161
      %p168 = scmp.eq.s32.totalorder %s32, 1
      %p169 = por %p167, %p168
      %p170 = scmp.ne.s32.totalorder %s161, %s162
      %p171 = scmp.eq.s32.totalorder %s32, 0
      %p172 = por %p170, %p171
      %p173 = scmp.ne.s32.totalorder %s161, %s162
      %p174 = scmp.eq.s32.totalorder %s33, 1
      %p175 = por %p173, %p174
      %p177 = scmp.ne.s32.totalorder %s162, %s176
      %p178 = scmp.eq.s32.totalorder %s33, 0
      %p179 = por %p177, %p178
      %s181 = sadd.s32 %s180, 1
      %p184 = scmp.eq.s32.totalorder %s27, 1
      %p185 = scmp.ne.s32.totalorder %s180, %s182
      %p186 = scmp.eq.s32.totalorder %s27, 0
      %p187 = por %p185, %p186
      %p188 = scmp.ne.s32.totalorder %s180, %s182
      %p189 = scmp.eq.s32.totalorder %s32, 1
      %p190 = por %p188, %p189
      %p191 = scmp.ne.s32.totalorder %s182, %s183
      %p192 = scmp.eq.s32.totalorder %s32, 0
      %p193 = por %p191, %p192
      %p194 = scmp.ne.s32.totalorder %s182, %s183
      %p195 = scmp.eq.s32.totalorder %s33, 1
      %p196 = por %p194, %p195
      %p198 = scmp.ne.s32.totalorder %s183, %s197
      %p199 = scmp.eq.s32.totalorder %s33, 0
      %p200 = por %p198, %p199
      %s201 = ssub.s32 %s34, %s46
      %s202 = ssub.s32 %s35, %s42
      %s203 = sor.u32 %s201, %s202
      %p204 = scmp.eq.s32.totalorder %s203, 0
      %s206 = sadd.s32 %s205, 1
      %s207 = scalar_select %p204, %s205, %s206
      %p210 = pneg %p204
      %p211 = scmp.eq.s32.totalorder %s27, 1
      %p212 = por %p210, %p211
      %p213 = scmp.ne.s32.totalorder %s205, %s208
      %p214 = scmp.eq.s32.totalorder %s27, 0
      %p215 = por %p213, %p214
      %p216 = scmp.ne.s32.totalorder %s205, %s208
      %p217 = scmp.eq.s32.totalorder %s32, 1
      %p218 = por %p216, %p217
      %p219 = scmp.ne.s32.totalorder %s208, %s209
      %p220 = scmp.eq.s32.totalorder %s32, 0
      %p221 = por %p219, %p220
      %p222 = scmp.ne.s32.totalorder %s208, %s209
      %p223 = scmp.eq.s32.totalorder %s33, 1
      %p224 = por %p222, %p223
      %p226 = scmp.ne.s32.totalorder %s209, %s225
      %p227 = scmp.eq.s32.totalorder %s33, 0
      %p228 = por %p226, %p227
      %s229 = ssub.s32 %s34, %s46
      %s230 = ssub.s32 %s35, %s42
      %s231 = sor.u32 %s229, %s230
      %p232 = scmp.eq.s32.totalorder %s231, 0
      %s234 = sadd.s32 %s233, 1
      %s235 = scalar_select %p232, %s233, %s234
      %p238 = pneg %p232
      %p239 = scmp.eq.s32.totalorder %s27, 1
      %p240 = por %p238, %p239
      %p241 = scmp.ne.s32.totalorder %s233, %s236
      %p242 = scmp.eq.s32.totalorder %s27, 0
      %p243 = por %p241, %p242
      %p244 = scmp.ne.s32.totalorder %s233, %s236
      %p245 = scmp.eq.s32.totalorder %s32, 1
      %p246 = por %p244, %p245
      %p247 = scmp.ne.s32.totalorder %s236, %s237
      %p248 = scmp.eq.s32.totalorder %s32, 0
      %p249 = por %p247, %p248
      %p250 = scmp.ne.s32.totalorder %s236, %s237
      %p251 = scmp.eq.s32.totalorder %s33, 1
      %p252 = por %p250, %p251
      %p254 = scmp.ne.s32.totalorder %s237, %s253
      %p255 = scmp.eq.s32.totalorder %s33, 0
      %p256 = por %p254, %p255
      %p257 = scmp.le.s32.totalorder 1, %s27
      %p258 = scmp.lt.s32.totalorder %s27, 3
      %p259 = pnand %p257, %p258
      %p260 = pneg %p259
      // Predicated region
      $region9: #{tpu_custom_call.1} parent=5 // pred_check
        _
      $region10: #{tpu_custom_call.1} parent=5 // pred_check_branch
        %262 = sbr.rel (%p259) target = $region12
      $region11: #{tpu_custom_call.1} parent=5 // pred_region
        %s263 = ssub.s32 %s27, 1
        // Predicated region
        $region13: #{tpu_custom_call.1} parent=11 // pred_check
          %p264 = pneg %p88
        $region14: #{tpu_custom_call.1} parent=11 // pred_check_branch
          %266 = sbr.rel (%p264) target = $region16
        $region15: #{tpu_custom_call.1} parent=11 // pred_region
          %s268 = ssub.s32 16, 16
          %269 = vsyncadd [#allocation6], %s268
          %s271 = sshll.u32 [#allocation5], 4
          %s272 = int_to_ptr.vmem [resolvable:$true] %s271
          %274 = dma.hbm_to_vmem [thread:$0]  %s1, 16, %s272, [#allocation6]
        $region16: #{tpu_custom_call.1} parent=11 // pred_fallthru
          _
        // Predicated region
        $region17: #{tpu_custom_call.1} parent=11 // pred_check
          %p275 = pneg %p109
        $region18: #{tpu_custom_call.1} parent=11 // pred_check_branch
          %277 = sbr.rel (%p275) target = $region20
        $region19: #{tpu_custom_call.1} parent=11 // pred_region
          %s279 = ssub.s32 16, 16
          %280 = vsyncadd [#allocation6], %s279
          %s282 = sshll.u32 [#allocation7], 4
          %s283 = int_to_ptr.vmem [resolvable:$true] %s282
          %285 = dma.hbm_to_vmem [thread:$0]  %s2, 16, %s283, [#allocation6]
        $region20: #{tpu_custom_call.1} parent=11 // pred_fallthru
          _
        // Predicated region
        $region21: #{tpu_custom_call.1} parent=11 // pred_check
          %p286 = pneg %p130
        $region22: #{tpu_custom_call.1} parent=11 // pred_check_branch
          %288 = sbr.rel (%p286) target = $region24
        $region23: #{tpu_custom_call.1} parent=11 // pred_region
          %s290 = ssub.s32 256, 256
          %291 = vsyncadd [#allocation9], %s290
          %s292 = sshll.u32 [#allocation8], 4
          %s293 = int_to_ptr.vmem [resolvable:$true] %s292
          %298 = dma.hbm_to_vmem [thread:$0]  %s3, 256, %s293, [#allocation9], 64, 64, 4
        $region24: #{tpu_custom_call.1} parent=11 // pred_fallthru
          _
        // Predicated region
        $region25: #{tpu_custom_call.1} parent=11 // pred_check
          %p299 = pneg %p151
        $region26: #{tpu_custom_call.1} parent=11 // pred_check_branch
          %301 = sbr.rel (%p299) target = $region28
        $region27: #{tpu_custom_call.1} parent=11 // pred_region
          %s303 = ssub.s32 16, 16
          %304 = vsyncadd [#allocation9], %s303
          %s306 = sshll.u32 [#allocation10], 4
          %s307 = int_to_ptr.vmem [resolvable:$true] %s306
          %309 = dma.hbm_to_vmem [thread:$0]  %s4, 16, %s307, [#allocation9]
        $region28: #{tpu_custom_call.1} parent=11 // pred_fallthru
          _
        // Predicated region
        $region29: #{tpu_custom_call.1} parent=11 // pred_check
          %p310 = pneg %p172
        $region30: #{tpu_custom_call.1} parent=11 // pred_check_branch
          %312 = sbr.rel (%p310) target = $region32
        $region31: #{tpu_custom_call.1} parent=11 // pred_region
          %s314 = ssub.s32 256, 256
          %315 = vsyncadd [#allocation12], %s314
          %s316 = sshll.u32 [#allocation11], 4
          %s317 = int_to_ptr.vmem [resolvable:$true] %s316
          %322 = dma.hbm_to_vmem [thread:$0]  %s5, 256, %s317, [#allocation12], 64, 64, 4
        $region32: #{tpu_custom_call.1} parent=11 // pred_fallthru
          _
        // Predicated region
        $region33: #{tpu_custom_call.1} parent=11 // pred_check
          %p323 = pneg %p193
        $region34: #{tpu_custom_call.1} parent=11 // pred_check_branch
          %325 = sbr.rel (%p323) target = $region36
        $region35: #{tpu_custom_call.1} parent=11 // pred_region
          %s327 = ssub.s32 16, 16
          %328 = vsyncadd [#allocation12], %s327
          %s330 = sshll.u32 [#allocation13], 4
          %s331 = int_to_ptr.vmem [resolvable:$true] %s330
          %333 = dma.hbm_to_vmem [thread:$0]  %s6, 16, %s331, [#allocation12]
        $region36: #{tpu_custom_call.1} parent=11 // pred_fallthru
          _
      $region12: #{tpu_custom_call.1} parent=5 // pred_fallthru
        _
      %p334 = scmp.lt.s32.totalorder %s27, 2
      // Predicated region
      $region37: #{tpu_custom_call.1} parent=5 // pred_check
        %p335 = pneg %p334
      $region38: #{tpu_custom_call.1} parent=5 // pred_check_branch
        %337 = sbr.rel (%p335) target = $region40
      $region39: #{tpu_custom_call.1} parent=5 // pred_region
        // Predicated region
        $region41: #{tpu_custom_call.1} parent=39 // pred_check
          %p338 = pneg %p61
        $region42: #{tpu_custom_call.1} parent=39 // pred_check_branch
          %340 = sbr.rel (%p338) target = $region44
        $region43: #{tpu_custom_call.1} parent=39 // pred_region
          %s341 = sand.u32 %s51, 1
          %s342 = scalar_lea.sflag [#allocation3], %s341
          %s343 = sand.u32 %s51, 1
          %s344 = smul.addr %s343, 8
          %s345 = scalar_lea.vmem [#allocation2], %s344
          %s347 = ssub.s32 128, 128
          %348 = vsyncadd %s342, %s347
          %s349 = sadd.s32 %s35, %s34
          %s350 = smul.addr %s349, 128
          %s351 = scalar_lea.hbm %s0, %s350
          %s353 = sshll.u32 %s345, 4
          %s354 = int_to_ptr.vmem [resolvable:$true] %s353
          %356 = dma.hbm_to_vmem [thread:$0]  %s351, 128, %s354, %s342
        $region44: #{tpu_custom_call.1} parent=39 // pred_fallthru
          _
      $region40: #{tpu_custom_call.1} parent=5 // pred_fallthru
        _
      %p357 = scmp.le.s32.totalorder 1, %s27
      %p358 = scmp.lt.s32.totalorder %s27, 3
      %p359 = pnand %p357, %p358
      %p360 = pneg %p359
      // Predicated region
      $region45: #{tpu_custom_call.1} parent=5 // pred_check
        _
      $region46: #{tpu_custom_call.1} parent=5 // pred_check_branch
        %362 = sbr.rel (%p359) target = $region48
      $region47: #{tpu_custom_call.1} parent=5 // pred_region
        %s363 = ssub.s32 %s27, 1
        %s364 = sand.u32 %s54, 1
        %s365 = scalar_lea.sflag [#allocation3], %s364
        %s366 = sand.u32 %s54, 1
        %s367 = smul.addr %s366, 8
        %s368 = scalar_lea.vmem [#allocation2], %s367
        // Predicated region
        $region49: #{tpu_custom_call.1} parent=47 // pred_check
          %p369 = pneg %p67
        $region50: #{tpu_custom_call.1} parent=47 // pred_check_branch
          %371 = sbr.rel (%p369) target = $region52
        $region51: #{tpu_custom_call.1} parent=47 // pred_region
          %372 = dma.done %s365, 128
        $region52: #{tpu_custom_call.1} parent=47 // pred_fallthru
          _
        // Predicated region
        $region53: #{tpu_custom_call.1} parent=47 // pred_check
          %p373 = pneg %p88
        $region54: #{tpu_custom_call.1} parent=47 // pred_check_branch
          %375 = sbr.rel (%p373) target = $region56
        $region55: #{tpu_custom_call.1} parent=47 // pred_region
          %376 = dma.done [#allocation6], 16
        $region56: #{tpu_custom_call.1} parent=47 // pred_fallthru
          _
        // Predicated region
        $region57: #{tpu_custom_call.1} parent=47 // pred_check
          %p377 = pneg %p109
        $region58: #{tpu_custom_call.1} parent=47 // pred_check_branch
          %379 = sbr.rel (%p377) target = $region60
        $region59: #{tpu_custom_call.1} parent=47 // pred_region
          %380 = dma.done [#allocation6], 16
        $region60: #{tpu_custom_call.1} parent=47 // pred_fallthru
          _
        // Predicated region
        $region61: #{tpu_custom_call.1} parent=47 // pred_check
          %p381 = pneg %p130
        $region62: #{tpu_custom_call.1} parent=47 // pred_check_branch
          %383 = sbr.rel (%p381) target = $region64
        $region63: #{tpu_custom_call.1} parent=47 // pred_region
          %384 = dma.done [#allocation9], 256
        $region64: #{tpu_custom_call.1} parent=47 // pred_fallthru
          _
        // Predicated region
        $region65: #{tpu_custom_call.1} parent=47 // pred_check
          %p385 = pneg %p151
        $region66: #{tpu_custom_call.1} parent=47 // pred_check_branch
          %387 = sbr.rel (%p385) target = $region68
        $region67: #{tpu_custom_call.1} parent=47 // pred_region
          %388 = dma.done [#allocation9], 16
        $region68: #{tpu_custom_call.1} parent=47 // pred_fallthru
          _
        // Predicated region
        $region69: #{tpu_custom_call.1} parent=47 // pred_check
          %p389 = pneg %p172
        $region70: #{tpu_custom_call.1} parent=47 // pred_check_branch
          %391 = sbr.rel (%p389) target = $region72
        $region71: #{tpu_custom_call.1} parent=47 // pred_region
          %392 = dma.done [#allocation12], 256
        $region72: #{tpu_custom_call.1} parent=47 // pred_fallthru
          _
        // Predicated region
        $region73: #{tpu_custom_call.1} parent=47 // pred_check
          %p393 = pneg %p193
        $region74: #{tpu_custom_call.1} parent=47 // pred_check_branch
          %395 = sbr.rel (%p393) target = $region76
        $region75: #{tpu_custom_call.1} parent=47 // pred_region
          %396 = dma.done [#allocation12], 16
        $region76: #{tpu_custom_call.1} parent=47 // pred_fallthru
          _
        %s397 = sand.u32 %s54, 1
        %s398 = scalar_lea.sflag [#allocation3], %s397
        %s399 = sand.u32 %s54, 1
        %s400 = smul.addr %s399, 8
        %s401 = scalar_lea.vmem [#allocation2], %s400
        %p402 = pneg %p67
        %p403 = pneg %p64
        %p404 = pneg %p88
        %p405 = pneg %p85
        %p406 = pneg %p109
        %p407 = pneg %p106
        %p408 = pneg %p130
        %p409 = pneg %p127
        %p410 = pneg %p151
        %p411 = pneg %p148
        %p412 = pneg %p172
        %p413 = pneg %p169
        %p414 = pneg %p193
        %p415 = pneg %p190
        %p416 = pneg %p221
        %p417 = pneg %p218
        %s418 = sand.u32 %s208, 1
        %s419 = scalar_lea.sflag [#allocation4], %s418
        %s420 = sand.u32 %s208, 1
        %s421 = smul.addr %s420, 16
        %s422 = scalar_lea.vmem [#allocation14], %s421
        %p423 = pneg %p249
        %p424 = pneg %p246
        %s425 = sand.u32 %s236, 1
        %s426 = scalar_lea.sflag [#allocation16], %s425
        %s427 = sand.u32 %s236, 1
        %s428 = smul.addr %s427, 16
        %s429 = scalar_lea.vmem [#allocation15], %s428
        %v431 = vld [vmem:[%s368] sm:$0xff]
        %v432 = vld [vmem:[#allocation5] sm:$0x1]
        %v433 = vld [vmem:[#allocation7] sm:$0x1]
        %vm434 = vcmask 261120
        %v435 = vsel %vm434, %v431, 0.0
        %436 = vadd.xlane.f32.xlu0 %v435
        %v437 = vpop.xlane.xlu0 %436
        %v438 = vrcp.pop 32.0
        %v439 = vmul.f32 %v437, %v438
        %v440 = vsub.f32 %v431, %v439
        %v441 = vmul.f32 %v440, %v440
        %v442 = vsel %vm434, %v441, 0.0
        %443 = vadd.xlane.f32.xlu0 %v442
        %v444 = vpop.xlane.xlu0 %443
        %v445 = vmul.f32 %v444, %v438
        %v446 = vadd.f32 %v445, 1e-05
        %v447 = vrsqrt.pop %v446
        %v448 = vmul.f32 %v440, %v447
        %v450 = vlaneseq
        %v451 = vshrl.u32 %v450, 7
        %v452 = vsub.s32 0, %v451
        %v453 = vrot.slane %v432, %v452
        %v455 = vmul.f32 %v448, %v453
        %v457 = vlaneseq
        %v458 = vshrl.u32 %v457, 7
        %v459 = vsub.s32 0, %v458
        %v460 = vrot.slane %v433, %v459
        %v462 = vadd.f32 %v455, %v460
        %v463 = vpack.c.bf16 %v462, %v462
        %v464 = vld [vmem:[#allocation8] sm:$0xf]
        %v465 = vld [vmem:[#allocation8 + $0x4] sm:$0xf]
        %v466 = vld [vmem:[#allocation8 + $0x8] sm:$0xf]
        %v467 = vld [vmem:[#allocation8 + $0xc] sm:$0xf]
        %v468 = vld [vmem:[#allocation10] sm:$0x1]
        %v470 = vlaneseq
        %v471 = vshrl.u32 %v470, 7
        %v472 = vsub.s32 0, %v471
        %v473 = vrot.slane %v468, %v472
        %v479 = vunpack.c.l.b16 %v464
        %v480 = vunpack.c.l.b16 %v465
        %v481 = vunpack.c.l.b16 %v466
        %v482 = vunpack.c.l.b16 %v467
        %v483 = vpack.c.b16 %v480, %v479
        %v484 = vpack.c.b16 %v482, %v481
        %v488 = vsel %vm434, %v463, 0
        %490 = vmatprep.subr.bf16.mxu0 0
        %491 = vmatpush1.bf16.msra.mxu0 %v483
        %492 = vmatprep.subr.bf16.mxu0 0
        %493 = vmatpush1.bf16.msra.mxu0 %v484
        %494 = vmatprep.subr.bf16.mxu0 0
        %495 = vmatpush1.bf16.msra.mxu0 0
        %496 = vmatprep.subr.bf16.mxu0 0
        %497 = vmatpush1.bf16.msra.mxu0 0
        %498 = vmatprep.subr.bf16.mxu0 0
        %499 = vmatpush1.bf16.msra.mxu0 0
        %500 = vmatprep.subr.bf16.mxu0 0
        %501 = vmatpush1.bf16.msra.mxu0 0
        %502 = vmatprep.subr.bf16.mxu0 0
        %503 = vmatpush1.bf16.msra.mxu0 0
        %504 = vmatprep.subr.bf16.mxu0 0
        %505 = vmatpush1.bf16.msra.mxu0 0
        %506 = vmatprep.subr.bf16.mxu0 0
        %507 = vmatpush1.bf16.msra.mxu0 0
        %508 = vmatprep.subr.bf16.mxu0 0
        %509 = vmatpush1.bf16.msra.mxu0 0
        %510 = vmatprep.subr.bf16.mxu0 0
        %511 = vmatpush1.bf16.msra.mxu0 0
        %512 = vmatprep.subr.bf16.mxu0 0
        %513 = vmatpush1.bf16.msra.mxu0 0
        %514 = vmatprep.subr.bf16.mxu0 0
        %515 = vmatpush1.bf16.msra.mxu0 0
        %516 = vmatprep.subr.bf16.mxu0 0
        %517 = vmatpush1.bf16.msra.mxu0 0
        %518 = vmatprep.subr.bf16.mxu0 0
        %519 = vmatpush1.bf16.msra.mxu0 0
        %520 = vmatprep.subr.bf16.mxu0 0
        %521 = vmatpush1.bf16.msra.mxu0 0
        %522 = vmatprep.mubr.bf16.mxu0 0
        %523 = vmatmul.mubr.bf16.gmra.mrb[0].mxu0 %v488
        %v524 = vpop.f32.mrb[0].mxu0
        %v525 = vadd.f32 %v473, %v524
        %v526 = vpop.f32.mrb[0].mxu0
        %v527 = vpop.f32.mrb[0].mxu0
        %v528 = vpop.f32.mrb[0].mxu0
        %529 = vdwg.mxu0
        %v530 = vld [vmem:[#allocation11] sm:$0xf]
        %v531 = vld [vmem:[#allocation11 + $0x4] sm:$0xf]
        %v532 = vld [vmem:[#allocation11 + $0x8] sm:$0xf]
        %v533 = vld [vmem:[#allocation11 + $0xc] sm:$0xf]
        %v534 = vld [vmem:[#allocation13] sm:$0x1]
        %v536 = vlaneseq
        %v537 = vshrl.u32 %v536, 7
        %v538 = vsub.s32 0, %v537
        %v539 = vrot.slane %v534, %v538
        %v545 = vunpack.c.l.b16 %v530
        %v546 = vunpack.c.l.b16 %v531
        %v547 = vunpack.c.l.b16 %v532
        %v548 = vunpack.c.l.b16 %v533
        %v549 = vpack.c.b16 %v546, %v545
        %v550 = vpack.c.b16 %v548, %v547
        %553 = vmatprep.subr.bf16.mxu0 0
        %554 = vmatpush1.bf16.msra.mxu0 %v549
        %555 = vmatprep.subr.bf16.mxu0 0
        %556 = vmatpush1.bf16.msra.mxu0 %v550
        %557 = vmatprep.subr.bf16.mxu0 0
        %558 = vmatpush1.bf16.msra.mxu0 0
        %559 = vmatprep.subr.bf16.mxu0 0
        %560 = vmatpush1.bf16.msra.mxu0 0
        %561 = vmatprep.subr.bf16.mxu0 0
        %562 = vmatpush1.bf16.msra.mxu0 0
        %563 = vmatprep.subr.bf16.mxu0 0
        %564 = vmatpush1.bf16.msra.mxu0 0
        %565 = vmatprep.subr.bf16.mxu0 0
        %566 = vmatpush1.bf16.msra.mxu0 0
        %567 = vmatprep.subr.bf16.mxu0 0
        %568 = vmatpush1.bf16.msra.mxu0 0
        %569 = vmatprep.subr.bf16.mxu0 0
        %570 = vmatpush1.bf16.msra.mxu0 0
        %571 = vmatprep.subr.bf16.mxu0 0
        %572 = vmatpush1.bf16.msra.mxu0 0
        %573 = vmatprep.subr.bf16.mxu0 0
        %574 = vmatpush1.bf16.msra.mxu0 0
        %575 = vmatprep.subr.bf16.mxu0 0
        %576 = vmatpush1.bf16.msra.mxu0 0
        %577 = vmatprep.subr.bf16.mxu0 0
        %578 = vmatpush1.bf16.msra.mxu0 0
        %579 = vmatprep.subr.bf16.mxu0 0
        %580 = vmatpush1.bf16.msra.mxu0 0
        %581 = vmatprep.subr.bf16.mxu0 0
        %582 = vmatpush1.bf16.msra.mxu0 0
        %583 = vmatprep.subr.bf16.mxu0 0
        %584 = vmatpush1.bf16.msra.mxu0 0
        %585 = vmatprep.mubr.bf16.mxu0 0
        %586 = vmatmul.mubr.bf16.gmra.mrb[0].mxu0 %v488
        %v587 = vpop.f32.mrb[0].mxu0
        %v588 = vadd.f32 %v539, %v587
        %v589 = vpop.f32.mrb[0].mxu0
        %v590 = vpop.f32.mrb[0].mxu0
        %v591 = vpop.f32.mrb[0].mxu0
        %592 = vdwg.mxu0
        %593 = vxpose.xlu0.b32.start [1/16] %v525, 128
        %594 = vxpose.xlu0.b32.cont [2/16] 0.0, 128
        %595 = vxpose.xlu0.b32.cont [3/16] 0.0, 128
        %596 = vxpose.xlu0.b32.cont [4/16] 0.0, 128
        %597 = vxpose.xlu0.b32.cont [5/16] 0.0, 128
        %598 = vxpose.xlu0.b32.cont [6/16] 0.0, 128
        %599 = vxpose.xlu0.b32.cont [7/16] 0.0, 128
        %600 = vxpose.xlu0.b32.cont [8/16] 0.0, 128
        %601 = vxpose.xlu0.b32.cont [9/16] 0.0, 128
        %602 = vxpose.xlu0.b32.cont [10/16] 0.0, 128
        %603 = vxpose.xlu0.b32.cont [11/16] 0.0, 128
        %604 = vxpose.xlu0.b32.cont [12/16] 0.0, 128
        %605 = vxpose.xlu0.b32.cont [13/16] 0.0, 128
        %606 = vxpose.xlu0.b32.cont [14/16] 0.0, 128
        %607 = vxpose.xlu0.b32.cont [15/16] 0.0, 128
        %608 = vxpose.xlu0.b32.end [16/16] 0.0, 128
        %v609 = vpop.trf.xlu0
        %v610 = vpop.trf.xlu0
        %v611 = vpop.trf.xlu0
        %v612 = vpop.trf.xlu0
        %v613 = vpop.trf.xlu0
        %v614 = vpop.trf.xlu0
        %v615 = vpop.trf.xlu0
        %v616 = vpop.trf.xlu0
        %v617 = vpop.trf.xlu0
        %v618 = vpop.trf.xlu0
        %v619 = vpop.trf.xlu0
        %v620 = vpop.trf.xlu0
        %v621 = vpop.trf.xlu0
        %v622 = vpop.trf.xlu0
        %v623 = vpop.trf.xlu0
        %v624 = vpop.trf.xlu0
        %v625 = vpack.c.bf16 %v610, %v609
        %v626 = vpack.c.bf16 %v612, %v611
        %v629 = vunpack.c.l.b16 %v625
        %v630 = vunpack.c.h.b16 %v625
        %v631 = vunpack.c.l.b16 %v626
        %v632 = vunpack.c.h.b16 %v626
        %v633 = vpack.c.b16 %v629, %v629
        %v634 = vpack.c.b16 %v630, %v630
        %v635 = vpack.c.b16 %v631, %v631
        %v636 = vpack.c.b16 %v632, %v632
        %vm641 = vcmask 60416
        %642 = vst.msk [vmem:[%s422] sm:$0xf] %vm641, %v633
        %643 = vst.msk [vmem:[%s422 + $0x4] sm:$0xf] %vm641, %v634
        %644 = vst.msk [vmem:[%s422 + $0x8] sm:$0xf] %vm641, %v635
        %645 = vst.msk [vmem:[%s422 + $0xc] sm:$0xf] %vm641, %v636
        %v646 = vpack.c.bf16 %v588, %v588
        %647 = vst.msk [vmem:[%s429] sm:$0xf] %vm641, %v646
        %v649 = vunpack.c.l.b16 %v646
        %v650 = vpack.c.b16 %v649, %v649
        %651 = vrot.lane.b32.xlu0 %v650, 120
        %v652 = vpop.permute.xlu0 %651
        %s654 = scalar_lea.vmem %s429, 4 [#allocation15]
        %655 = vst.msk [vmem:[%s654] sm:$0xf] %vm641, %v652
        %656 = vrot.lane.b32.xlu0 %v650, 112
        %v657 = vpop.permute.xlu0 %656
        %s659 = scalar_lea.vmem %s429, 8 [#allocation15]
        %660 = vst.msk [vmem:[%s659] sm:$0xf] %vm641, %v657
        %661 = vrot.lane.b32.xlu0 %v650, 104
        %v662 = vpop.permute.xlu0 %661
        %s664 = scalar_lea.vmem %s429, 12 [#allocation15]
        %665 = vst.msk [vmem:[%s664] sm:$0xf] %vm641, %v662
        %s666 = sand.u32 %s208, 1
        %s667 = scalar_lea.sflag [#allocation4], %s666
        %s668 = sand.u32 %s208, 1
        %s669 = smul.addr %s668, 16
        %s670 = scalar_lea.vmem [#allocation14], %s669
        %s671 = sand.u32 %s236, 1
        %s672 = scalar_lea.sflag [#allocation16], %s671
        %s673 = sand.u32 %s236, 1
        %s674 = smul.addr %s673, 16
        %s675 = scalar_lea.vmem [#allocation15], %s674
        // Predicated region
        $region77: #{tpu_custom_call.1} parent=47 // pred_check
          %p676 = pneg %p218
        $region78: #{tpu_custom_call.1} parent=47 // pred_check_branch
          %678 = sbr.rel (%p676) target = $region80
        $region79: #{tpu_custom_call.1} parent=47 // pred_region
          %s680 = ssub.s32 256, 256
          %681 = vsyncadd %s667, %s680
          %s682 = smul.addr %s36, 4
          %s683 = sadd.s32 %s37, %s682
          %s684 = smul.addr %s683, 64
          %s685 = scalar_lea.hbm %s7, %s684
          %s686 = sshll.u32 %s670, 4
          %s687 = int_to_ptr.vmem [resolvable:$true] %s686
          %692 = dma.vmem_to_hbm [thread:$0]  %s687, 256, %s685, %s667, 64, 64, 4
        $region80: #{tpu_custom_call.1} parent=47 // pred_fallthru
          _
        // Predicated region
        $region81: #{tpu_custom_call.1} parent=47 // pred_check
          %p693 = pneg %p246
        $region82: #{tpu_custom_call.1} parent=47 // pred_check_branch
          %695 = sbr.rel (%p693) target = $region84
        $region83: #{tpu_custom_call.1} parent=47 // pred_region
          %s697 = ssub.s32 256, 256
          %698 = vsyncadd %s672, %s697
          %s699 = smul.addr %s36, 4
          %s700 = sadd.s32 %s37, %s699
          %s701 = smul.addr %s700, 64
          %s702 = scalar_lea.hbm %s8, %s701
          %s703 = sshll.u32 %s675, 4
          %s704 = int_to_ptr.vmem [resolvable:$true] %s703
          %709 = dma.vmem_to_hbm [thread:$0]  %s704, 256, %s702, %s672, 64, 64, 4
        $region84: #{tpu_custom_call.1} parent=47 // pred_fallthru
          _
      $region48: #{tpu_custom_call.1} parent=5 // pred_fallthru
        _
      %p710 = scmp.le.s32.totalorder 2, %s27
      // Predicated region
      $region85: #{tpu_custom_call.1} parent=5 // pred_check
        %p711 = pneg %p710
      $region86: #{tpu_custom_call.1} parent=5 // pred_check_branch
        %713 = sbr.rel (%p711) target = $region88
      $region87: #{tpu_custom_call.1} parent=5 // pred_region
        %s714 = ssub.s32 %s27, 2
        // Predicated region
        $region89: #{tpu_custom_call.1} parent=87 // pred_check
          %p715 = pneg %p224
        $region90: #{tpu_custom_call.1} parent=87 // pred_check_branch
          %717 = sbr.rel (%p715) target = $region92
        $region91: #{tpu_custom_call.1} parent=87 // pred_region
          %s718 = sand.u32 %s209, 1
          %s719 = scalar_lea.sflag [#allocation4], %s718
          %s720 = sand.u32 %s209, 1
          %s721 = smul.addr %s720, 16
          %s722 = scalar_lea.vmem [#allocation14], %s721
          %723 = dma.done %s719, 256
        $region92: #{tpu_custom_call.1} parent=87 // pred_fallthru
          _
        // Predicated region
        $region93: #{tpu_custom_call.1} parent=87 // pred_check
          %p724 = pneg %p252
        $region94: #{tpu_custom_call.1} parent=87 // pred_check_branch
          %726 = sbr.rel (%p724) target = $region96
        $region95: #{tpu_custom_call.1} parent=87 // pred_region
          %s727 = sand.u32 %s237, 1
          %s728 = scalar_lea.sflag [#allocation16], %s727
          %s729 = sand.u32 %s237, 1
          %s730 = smul.addr %s729, 16
          %s731 = scalar_lea.vmem [#allocation15], %s730
          %732 = dma.done %s728, 256
        $region96: #{tpu_custom_call.1} parent=87 // pred_fallthru
          _
      $region88: #{tpu_custom_call.1} parent=5 // pred_fallthru
        _
    $region6: #{tpu_custom_call.1} parent=1 // loop_footer
      %s31 = sadd.s32 1, %s27
    $region7: #{tpu_custom_call.1} parent=1 // loop_footer_branch
      %26 = sbr.rel target = $region3
    $region8: #{tpu_custom_call.1} parent=1 // loop_exit
      _
    %733 = vsyncpa [#allocation3], 1
    %s734 = scalar_lea.sflag [#allocation3], 1
    %735 = vsyncpa %s734, 1
    %736 = vsyncpa [#allocation6], 1
    %737 = vsyncpa [#allocation9], 1
    %738 = vsyncpa [#allocation12], 1
    %739 = vsyncpa [#allocation4], 1
    %s740 = scalar_lea.sflag [#allocation4], 1
    %741 = vsyncpa %s740, 1
    %742 = vsyncpa [#allocation16], 1
    %s743 = scalar_lea.sflag [#allocation16], 1
    %744 = vsyncpa %s743, 1

</llo_original>
